<compile_context>
chip_gen: v5e
topology: v5e:2x2
jax: 0.10.0
libtpu: 0.0.40
codegen_flags: <defaults>
</compile_context>

<pallas_src>
import functools

import jax
import jax.numpy as jnp
from jax import lax
from jax.experimental import pallas as pl
from jax.experimental.pallas import tpu as pltpu

EPS = 1e-5


# --------------------------------------------------------------------------
# small host-side helpers (parameter-sized; in production precompute once)
# --------------------------------------------------------------------------
def _pick_row_tile(m, target):
    """Largest divisor of m that is <= target and a multiple of 8 (or m)."""
    t = min(target, m)
    for cand in range(t, 0, -1):
        if m % cand == 0 and (cand % 8 == 0 or cand == m):
            return cand
    return m


def _tile_channels(v, W):
    # (C,) -> (1, W*C) with element [w*C + c] = v[c]
    return jnp.tile(v.reshape(1, -1), (1, W))


def _conv_band(w, W):
    """(3,3,3,Cin,Cout) -> (3,3,W*Cin,W*Cout) banded along W (stride 1, pad 1)."""
    _, _, _, cin, cout = w.shape
    band = jnp.zeros((3, 3, W * cin, W * cout), w.dtype)
    for wo in range(W):
        for kw in range(3):
            wi = wo + kw - 1
            if 0 <= wi < W:
                band = band.at[:, :, wi * cin:(wi + 1) * cin,
                               wo * cout:(wo + 1) * cout].set(w[:, :, kw])
    return band


def _block_diag_1x1(w, W):
    """(Cin,Cout) -> (W*Cin, W*Cout) block-diagonal (1x1x1 conv in W*C layout)."""
    cin, cout = w.shape
    band = jnp.zeros((W * cin, W * cout), w.dtype)
    for wo in range(W):
        band = band.at[wo * cin:(wo + 1) * cin,
                       wo * cout:(wo + 1) * cout].set(w)
    return band


# --------------------------------------------------------------------------
# BatchNorm statistics pass: per-channel sum / sum-of-squares, row-tiled
# --------------------------------------------------------------------------
def _bn_stats_kernel(x_ref, o_ref):
    @pl.when(pl.program_id(0) == 0)
    def _():
        o_ref[...] = jnp.zeros_like(o_ref)
    x = x_ref[...].astype(jnp.float32)
    o_ref[0:1, :] += jnp.sum(x, axis=0, keepdims=True)
    o_ref[1:2, :] += jnp.sum(x * x, axis=0, keepdims=True)


def bn_scale_shift(x2d, gamma, beta, W, C, eps, row_tile):
    """x2d: (M, W*C) lane-dense view.  Returns BN scale/shift tiled to (1, W*C)."""
    M, WC = x2d.shape
    assert WC == W * C
    tm = _pick_row_tile(M, row_tile)
    sums = pl.pallas_call(
        _bn_stats_kernel,
        out_shape=jax.ShapeDtypeStruct((2, WC), jnp.float32),
        grid=(M // tm,),
        in_specs=[pl.BlockSpec((tm, WC), lambda i: (i, 0))],
        out_specs=pl.BlockSpec((2, WC), lambda i: (0, 0)),
        compiler_params=pltpu.CompilerParams(
            dimension_semantics=("arbitrary",)),   # accumulating output
    )(x2d)
    s = sums.reshape(2, W, C).sum(axis=1)          # (2, C) — tiny finish
    count = M * W
    mean = s[0] / count
    var = s[1] / count - mean * mean               # biased, like torch train BN
    scale = gamma * lax.rsqrt(var + eps)
    shift = beta - mean * scale
    return _tile_channels(scale, W), _tile_channels(shift, W)


# --------------------------------------------------------------------------
# 1x1x1 shortcut conv as a row-tiled, lane-dense matmul
# --------------------------------------------------------------------------
def _pointwise_kernel(x_ref, w_ref, b_ref, o_ref):
    o_ref[...] = (jnp.dot(x_ref[...], w_ref[...],
                          preferred_element_type=jnp.float32)
                  + b_ref[...]).astype(o_ref.dtype)


def pointwise_conv(x2d, w_band, bias_t, row_tile):
    M, WCI = x2d.shape
    WCO = w_band.shape[1]
    tm = _pick_row_tile(M, row_tile)
    return pl.pallas_call(
        _pointwise_kernel,
        out_shape=jax.ShapeDtypeStruct((M, WCO), x2d.dtype),
        grid=(M // tm,),
        in_specs=[
            pl.BlockSpec((tm, WCI), lambda i: (i, 0)),
            pl.BlockSpec((WCI, WCO), lambda i: (0, 0)),
            pl.BlockSpec((1, WCO), lambda i: (0, 0)),
        ],
        out_specs=pl.BlockSpec((tm, WCO), lambda i: (i, 0)),
        compiler_params=pltpu.CompilerParams(
            dimension_semantics=("parallel",)),
    )(x2d, w_band, bias_t)


# --------------------------------------------------------------------------
# Fused  BN(train) + ReLU + 3x3x3 conv (pad 1, stride 1)  [+ residual add]
# --------------------------------------------------------------------------
def _fused_bn_relu_conv_kernel(x_ref, band_ref, bias_ref, scale_ref, shift_ref,
                               *rest, D, H, has_res):
    if has_res:
        res_ref, o_ref = rest
    else:
        (o_ref,) = rest
    wci = x_ref.shape[-1]            # W*Cin
    wco = o_ref.shape[-1]            # W*Cout

    x = x_ref[0]                                            # (D, H, W*Cin)
    scale = scale_ref[...].reshape(1, 1, wci)
    shift = shift_ref[...].reshape(1, 1, wci)
    act = jnp.maximum(x * scale + shift, 0.0)               # fused BN + ReLU

    # Zero halo along D and H, built in VMEM (W halo folded into the band).
    zd = jnp.zeros((1, H, wci), act.dtype)
    ap = jnp.concatenate([zd, act, zd], axis=0)             # (D+2, H,   W*Cin)
    zh = jnp.zeros((D + 2, 1, wci), act.dtype)
    ap = jnp.concatenate([zh, ap, zh], axis=1)              # (D+2, H+2, W*Cin)

    # 9 MXU dots: (D*H, W*Cin) @ (W*Cin, W*Cout), f32 accumulation.
    acc = jnp.zeros((D * H, wco), jnp.float32)
    for kd in range(3):
        for kh in range(3):
            patch = ap[kd:kd + D, kh:kh + H, :].reshape(D * H, wci)
            acc = acc + jnp.dot(patch, band_ref[kd, kh],
                                preferred_element_type=jnp.float32)

    acc = acc + bias_ref[...]                                # (1, W*Cout)
    if has_res:
        acc = acc + res_ref[0].astype(jnp.float32)           # fused out += res
    o_ref[0] = acc.astype(o_ref.dtype)                       # lane-dense store


def fused_bn_relu_conv(x4, band, bias_t, scale_t, shift_t, residual=None):
    """x4: (N, D, H, W*Cin); band: (3,3,W*Cin,W*Cout); residual: (N, D*H, W*Cout)."""
    n, d, h, wci = x4.shape
    wco = band.shape[-1]
    kern = functools.partial(_fused_bn_relu_conv_kernel, D=d, H=h,
                             has_res=residual is not None)
    in_specs = [
        pl.BlockSpec((1, d, h, wci), lambda i: (i, 0, 0, 0)),
        pl.BlockSpec((3, 3, wci, wco), lambda i: (0, 0, 0, 0)),
        pl.BlockSpec((1, wco), lambda i: (0, 0)),
        pl.BlockSpec((1, wci), lambda i: (0, 0)),
        pl.BlockSpec((1, wci), lambda i: (0, 0)),
    ]
    args = [x4, band, bias_t, scale_t, shift_t]
    if residual is not None:
        in_specs.append(pl.BlockSpec((1, d * h, wco), lambda i: (i, 0, 0)))
        args.append(residual)
    return pl.pallas_call(
        kern,
        out_shape=jax.ShapeDtypeStruct((n, d * h, wco), x4.dtype),
        grid=(n,),
        in_specs=in_specs,
        out_specs=pl.BlockSpec((1, d * h, wco), lambda i: (i, 0, 0)),
        compiler_params=pltpu.CompilerParams(
            dimension_semantics=("parallel",)),
    )(*args)


# --------------------------------------------------------------------------
# PostRes forward
# --------------------------------------------------------------------------
def post_res_forward(x_ncdhw, params, stride=1, eps=EPS, row_tile=512):
    x = jnp.transpose(x_ncdhw, (0, 2, 3, 4, 1))      # NCDHW -> NDHWC
    n, d, h, wd, cin = x.shape
    cout = params["conv1_w"].shape[-1]

    # ----- shortcut / residual (lane-dense (N, D*H, W*Cout) layout) -----
    if stride != 1 or cout != cin:
        xs = x[:, ::stride, ::stride, ::stride, :]
        ns, dsp, hsp, wsp, _ = xs.shape
        sc_band = _block_diag_1x1(params["sc_w"], wsp)
        sc_bias = _tile_channels(params["sc_b"], wsp)
        residual = pointwise_conv(xs.reshape(ns * dsp * hsp, wsp * cin),
                                  sc_band, sc_bias, row_tile)
        residual = residual.reshape(ns, dsp * hsp, wsp * cout)
    else:
        residual = x.reshape(n, d * h, wd * cout)     # identity (cin == cout)

    # ----- bn1 stats -> scale/shift; fused bn1+relu+conv1 -----
    scale1, shift1 = bn_scale_shift(x.reshape(n * d * h, wd * cin),
                                    params["bn1_g"], params["bn1_b"],
                                    wd, cin, eps, row_tile)
    band1 = _conv_band(params["conv1_w"], wd)
    bias1 = _tile_channels(params["conv1_b"], wd)
    y = fused_bn_relu_conv(x.reshape(n, d, h, wd * cin),
                           band1, bias1, scale1, shift1)   # (n, d*h, wd*cout)

    if stride != 1:
        # TODO(synk): fold the stride into the banded weights / index_map
        # instead of computing the stride-1 conv and subsampling.
        y = y.reshape(n, d, h, wd, cout)[:, ::stride, ::stride, ::stride, :]
        d, h, wd = y.shape[1:4]
        y = y.reshape(n, d * h, wd * cout)

    # ----- bn2 stats; fused bn2+relu+conv2 with residual add -----
    scale2, shift2 = bn_scale_shift(y.reshape(n * d * h, wd * cout),
                                    params["bn2_g"], params["bn2_b"],
                                    wd, cout, eps, row_tile)
    band2 = _conv_band(params["conv2_w"], wd)
    bias2 = _tile_channels(params["conv2_b"], wd)
    out = fused_bn_relu_conv(y.reshape(n, d, h, wd * cout),
                             band2, bias2, scale2, shift2, residual=residual)

    out = out.reshape(n, d, h, wd, cout)
    return jnp.transpose(out, (0, 4, 1, 2, 3))        # NDHWC -> NCDHW


# --------------------------------------------------------------------------
# pure-JAX reference
# --------------------------------------------------------------------------
def post_res_reference(x_ncdhw, params, stride=1, eps=EPS):
    x = jnp.transpose(x_ncdhw, (0, 2, 3, 4, 1))

    def bn_relu_ref(v, g, b):
        mean = jnp.mean(v, axis=(0, 1, 2, 3), keepdims=True)
        var = jnp.mean((v - mean) ** 2, axis=(0, 1, 2, 3), keepdims=True)
        return jnp.maximum((v - mean) * lax.rsqrt(var + eps) * g + b, 0.0)

    def conv_ref(v, w, b, s, pad):
        out = lax.conv_general_dilated(
            v, w, window_strides=(s, s, s), padding=[(pad, pad)] * 3,
            dimension_numbers=("NDHWC", "DHWIO", "NDHWC"))
        return out + b

    cin = x.shape[-1]
    cout = params["conv1_w"].shape[-1]
    if stride != 1 or cout != cin:
        residual = conv_ref(x, params["sc_w"].reshape(1, 1, 1, cin, cout),
                            params["sc_b"], stride, 0)
    else:
        residual = x
    a1 = bn_relu_ref(x, params["bn1_g"], params["bn1_b"])
    y = conv_ref(a1, params["conv1_w"], params["conv1_b"], stride, 1)
    a2 = bn_relu_ref(y, params["bn2_g"], params["bn2_b"])
    out = conv_ref(a2, params["conv2_w"], params["conv2_b"], 1, 1) + residual
    return jnp.transpose(out, (0, 4, 1, 2, 3))


if __name__ == "__main__":
    N, CIN, COUT, D, H, W = 2, 8, 16, 8, 8, 8   # PostRes(n_in=8, n_out=16, stride=1)
    STRIDE = 1

    key = jax.random.PRNGKey(0)
    k = jax.random.split(key, 4)
    x = jax.random.normal(k[0], (N, CIN, D, H, W), jnp.float32)  # NCDHW

    params = {
        "bn1_g": 1.0 + 0.05 * jnp.arange(CIN, dtype=jnp.float32),
        "bn1_b": 0.02 * jnp.arange(CIN, dtype=jnp.float32),
        "conv1_w": 0.1 * jax.random.normal(k[1], (3, 3, 3, CIN, COUT), jnp.float32),
        "conv1_b": 0.01 * jnp.arange(COUT, dtype=jnp.float32),
        "bn2_g": 1.0 - 0.03 * jnp.arange(COUT, dtype=jnp.float32),
        "bn2_b": -0.01 * jnp.arange(COUT, dtype=jnp.float32),
        "conv2_w": 0.1 * jax.random.normal(k[2], (3, 3, 3, COUT, COUT), jnp.float32),
        "conv2_b": 0.02 * jnp.arange(COUT, dtype=jnp.float32),
        "sc_w": 0.1 * jax.random.normal(k[3], (CIN, COUT), jnp.float32),
        "sc_b": 0.005 * jnp.arange(COUT, dtype=jnp.float32),
    }

    # row_tile=64 so the row-tiled stats / shortcut kernels take multiple grid
    # steps even at these toy sizes (use 512-2048 rows in production).
    out = post_res_forward(x, params, stride=STRIDE, row_tile=64)
    out = jax.block_until_ready(out)
    ref = post_res_reference(x, params, stride=STRIDE)

    assert out.shape == (N, COUT, D, H, W), out.shape
    err = float(jnp.max(jnp.abs(out - ref)))
    assert err < 1e-3, f"mismatch vs reference: max abs err = {err}"
    print("KERNEL_OK")
</pallas_src>

<mosaic_0001>
module attributes {stable_mosaic.version = 11 : i64} {
  func.func @_pointwise_kernel(%arg0: i32, %arg1: memref<64x64xf32, #tpu.memory_space<vmem>>, %arg2: memref<64x128xf32, #tpu.memory_space<vmem>>, %arg3: memref<1x128xf32, #tpu.memory_space<vmem>>, %arg4: memref<64x128xf32, #tpu.memory_space<vmem>>) attributes {dimension_semantics = [#tpu.dimension_semantics<parallel>], iteration_bounds = array<i64: 2>, scalar_prefetch = 0 : i64, scratch_operands = 0 : i64, tpu.core_type = #tpu.core_type<tc>, window_params = [{transform_indices = @transform_0, window_bounds = array<i64: 64, 64>}, {pipeline_mode = #tpu.pipeline_mode<synchronous>, transform_indices = @transform_1, window_bounds = array<i64: 64, 128>}, {pipeline_mode = #tpu.pipeline_mode<synchronous>, transform_indices = @transform_2, window_bounds = array<i64: 1, 128>}, {transform_indices = @transform_3, window_bounds = array<i64: 64, 128>}]} {
    %c0 = arith.constant 0 : index
    %c0_0 = arith.constant 0 : index
    %0 = vector.load %arg1[%c0, %c0_0] : memref<64x64xf32, #tpu.memory_space<vmem>>, vector<64x64xf32>
    %c0_1 = arith.constant 0 : index
    %c0_2 = arith.constant 0 : index
    %1 = vector.load %arg2[%c0_1, %c0_2] : memref<64x128xf32, #tpu.memory_space<vmem>>, vector<64x128xf32>
    %cst = arith.constant dense<0.000000e+00> : vector<64x128xf32>
    %2 = tpu.matmul %0, %1, %cst {dimension_numbers = #tpu.dot_dimension_numbers<[1], [0], [0], [1], [0, 0, 1, 1], [], []>} : vector<64x64xf32>, vector<64x128xf32>, vector<64x128xf32> -> vector<64x128xf32>
    %c0_3 = arith.constant 0 : index
    %c0_4 = arith.constant 0 : index
    %3 = vector.load %arg3[%c0_3, %c0_4] : memref<1x128xf32, #tpu.memory_space<vmem>>, vector<1x128xf32>
    %4 = vector.broadcast %3 : vector<1x128xf32> to vector<64x128xf32>
    %5 = arith.addf %2, %4 : vector<64x128xf32>
    %c0_5 = arith.constant 0 : index
    %c0_6 = arith.constant 0 : index
    %6 = vector.load %arg4[%c0_5, %c0_6] : memref<64x128xf32, #tpu.memory_space<vmem>>, vector<64x128xf32>
    tpu.vector_store %arg4[%c0_5, %c0_6], %5 {strides = array<i32>} : memref<64x128xf32, #tpu.memory_space<vmem>>, vector<64x128xf32>,
    return
  }
  func.func @transform_0(%arg0: i32) -> (i32, i32) {
    %c0_i32 = arith.constant 0 : i32
    %c0_i32_0 = arith.constant 0 : i32
    return %arg0, %c0_i32 : i32, i32
  }
  func.func @transform_1(%arg0: i32) -> (i32, i32) {
    %c0_i32 = arith.constant 0 : i32
    %c0_i32_0 = arith.constant 0 : i32
    %c0_i32_1 = arith.constant 0 : i32
    return %c0_i32, %c0_i32_0 : i32, i32
  }
  func.func @transform_2(%arg0: i32) -> (i32, i32) {
    %c0_i32 = arith.constant 0 : i32
    %c0_i32_0 = arith.constant 0 : i32
    %c0_i32_1 = arith.constant 0 : i32
    return %c0_i32, %c0_i32_0 : i32, i32
  }
  func.func @transform_3(%arg0: i32) -> (i32, i32) {
    %c0_i32 = arith.constant 0 : i32
    %c0_i32_0 = arith.constant 0 : i32
    return %arg0, %c0_i32 : i32, i32
  }
}

</mosaic_0001>

<llo_original>
// kernel: tpu_custom_call.1
$region0: #{tpu_custom_call.1}
  #allocation0 [shape = 'u32[]', space=smem, size = 0x4, offset = 0x4, fixed_abs, tag = 'smem constant byte address 0x4 - core index']
  #allocation1 [shape = 'u32[72,128]{1,0:T(1,128)}', space=vmem, size = 0x9000, scoped, tag = 'internal scratch']
  %s0 = inlined_call_operand.vmem [shape: f32[128,64], index: 0, kind: input, shape index: {}]
  %s1 = inlined_call_operand.vmem [shape: f32[64,128], index: 1, kind: input, shape index: {}]
  %s2 = inlined_call_operand.vmem [shape: f32[1,128], index: 2, kind: input, shape index: {}]
  %s3 = inlined_call_operand.hbm [shape: f32[128,128], index: 3, kind: output, shape index: {}]
  %s4 = sld [smem:[#allocation0]]
  $region45: #{tpu_custom_call.1} parent=0
    _
  %s6 = ssub.s32 1, %s4
  %s7 = scalar_select 0, %s6, %s4
  $region1: #{tpu_custom_call.1} parent=0
    #allocation2 [shape = 'u8[65536]{0}', space=vmem, size = 0x10000, scoped, tag = 'output window, operand 0']
    #allocation3 [shape = 's32[2]{0}', space=sflag, size = 0x8, scoped, tag = 'scoped memory for tpu_custom_call.1']
    %8 = vsyncpa [#allocation3], 0
    %s9 = scalar_lea.sflag [#allocation3], 1
    %10 = vsyncpa %s9, 0
    loop: start=0, step=1, limit=4
    $region2: #{tpu_custom_call.1} parent=1 // loop_pre_header
      _
    $region3: #{tpu_custom_call.1} parent=1 // loop_header
      %s12 = sphi 0, %s16
      %p13 = scmp.ge.s32.totalorder %s12, 4
      %s22 = sphi 0, %s24
      %s25 = sphi 0, %s22
      %s26 = sphi 0, %s25
      %s42 = sphi 0, %s26
      %s46 = sphi 0, %s46
      %s48 = sphi 0, %s46
      %s49 = sphi 0, %s48
      %s63 = sphi 0, %s49
      %s67 = sphi 0, %s67
      %s69 = sphi 0, %s67
      %s70 = sphi 0, %s69
      %s84 = sphi 0, %s70
      %s90 = sphi 0, %s92
      %s93 = sphi 0, %s90
      %s94 = sphi 0, %s93
      %s110 = sphi 0, %s94
    $region4: #{tpu_custom_call.1} parent=1 // loop_header_branch
      %15 = sbr.rel (%p13) target = $region8
    $region5: #{tpu_custom_call.1} parent=1 // loop_body
      %s17 = ssub.s32 %s12, 1
      %s18 = ssub.s32 %s12, 2
      %s19 = sadd.s32 %s12, 1
      %s20 = ssub.s32 %s12, %s19
      %p21 = scmp.eq.s32.totalorder %s20, 0
      %s23 = sadd.s32 %s22, 1
      %s24 = scalar_select %p21, %s22, %s23
      %p27 = pneg %p21
      %p28 = scmp.eq.s32.totalorder %s12, 1
      %p29 = por %p27, %p28
      %p30 = scmp.ne.s32.totalorder %s22, %s25
      %p31 = scmp.eq.s32.totalorder %s12, 0
      %p32 = por %p30, %p31
      %p33 = scmp.ne.s32.totalorder %s22, %s25
      %p34 = scmp.eq.s32.totalorder %s17, 1
      %p35 = por %p33, %p34
      %p36 = scmp.ne.s32.totalorder %s25, %s26
      %p37 = scmp.eq.s32.totalorder %s17, 0
      %p38 = por %p36, %p37
      %p39 = scmp.ne.s32.totalorder %s25, %s26
      %p40 = scmp.eq.s32.totalorder %s18, 1
      %p41 = por %p39, %p40
      %p43 = scmp.ne.s32.totalorder %s26, %s42
      %p44 = scmp.eq.s32.totalorder %s18, 0
      %p45 = por %p43, %p44
      %s47 = sadd.s32 %s46, 1
      %p50 = scmp.eq.s32.totalorder %s12, 1
      %p51 = scmp.ne.s32.totalorder %s46, %s48
      %p52 = scmp.eq.s32.totalorder %s12, 0
      %p53 = por %p51, %p52
      %p54 = scmp.ne.s32.totalorder %s46, %s48
      %p55 = scmp.eq.s32.totalorder %s17, 1
      %p56 = por %p54, %p55
      %p57 = scmp.ne.s32.totalorder %s48, %s49
      %p58 = scmp.eq.s32.totalorder %s17, 0
      %p59 = por %p57, %p58
      %p60 = scmp.ne.s32.totalorder %s48, %s49
      %p61 = scmp.eq.s32.totalorder %s18, 1
      %p62 = por %p60, %p61
      %p64 = scmp.ne.s32.totalorder %s49, %s63
      %p65 = scmp.eq.s32.totalorder %s18, 0
      %p66 = por %p64, %p65
      %s68 = sadd.s32 %s67, 1
      %p71 = scmp.eq.s32.totalorder %s12, 1
      %p72 = scmp.ne.s32.totalorder %s67, %s69
      %p73 = scmp.eq.s32.totalorder %s12, 0
      %p74 = por %p72, %p73
      %p75 = scmp.ne.s32.totalorder %s67, %s69
      %p76 = scmp.eq.s32.totalorder %s17, 1
      %p77 = por %p75, %p76
      %p78 = scmp.ne.s32.totalorder %s69, %s70
      %p79 = scmp.eq.s32.totalorder %s17, 0
      %p80 = por %p78, %p79
      %p81 = scmp.ne.s32.totalorder %s69, %s70
      %p82 = scmp.eq.s32.totalorder %s18, 1
      %p83 = por %p81, %p82
      %p85 = scmp.ne.s32.totalorder %s70, %s84
      %p86 = scmp.eq.s32.totalorder %s18, 0
      %p87 = por %p85, %p86
      %s88 = ssub.s32 %s12, %s19
      %p89 = scmp.eq.s32.totalorder %s88, 0
      %s91 = sadd.s32 %s90, 1
      %s92 = scalar_select %p89, %s90, %s91
      %p95 = pneg %p89
      %p96 = scmp.eq.s32.totalorder %s12, 1
      %p97 = por %p95, %p96
      %p98 = scmp.ne.s32.totalorder %s90, %s93
      %p99 = scmp.eq.s32.totalorder %s12, 0
      %p100 = por %p98, %p99
      %p101 = scmp.ne.s32.totalorder %s90, %s93
      %p102 = scmp.eq.s32.totalorder %s17, 1
      %p103 = por %p101, %p102
      %p104 = scmp.ne.s32.totalorder %s93, %s94
      %p105 = scmp.eq.s32.totalorder %s17, 0
      %p106 = por %p104, %p105
      %p107 = scmp.ne.s32.totalorder %s93, %s94
      %p108 = scmp.eq.s32.totalorder %s18, 1
      %p109 = por %p107, %p108
      %p111 = scmp.ne.s32.totalorder %s94, %s110
      %p112 = scmp.eq.s32.totalorder %s18, 0
      %p113 = por %p111, %p112
      %p114 = scmp.le.s32.totalorder 1, %s12
      %p115 = scmp.lt.s32.totalorder %s12, 3
      %p116 = pnand %p114, %p115
      %p117 = pneg %p116
      // Predicated region
      $region9: #{tpu_custom_call.1} parent=5 // pred_check
        _
      $region10: #{tpu_custom_call.1} parent=5 // pred_check_branch
        %119 = sbr.rel (%p116) target = $region12
      $region11: #{tpu_custom_call.1} parent=5 // pred_region
        %s120 = ssub.s32 %s12, 1
        // Predicated region
        $region13: #{tpu_custom_call.1} parent=11 // pred_check
          %p121 = pneg %p59
        $region14: #{tpu_custom_call.1} parent=11 // pred_check_branch
          %123 = sbr.rel (%p121) target = $region16
        $region15: #{tpu_custom_call.1} parent=11 // pred_region
          _
        $region16: #{tpu_custom_call.1} parent=11 // pred_fallthru
          _
        // Predicated region
        $region17: #{tpu_custom_call.1} parent=11 // pred_check
          %p124 = pneg %p80
        $region18: #{tpu_custom_call.1} parent=11 // pred_check_branch
          %126 = sbr.rel (%p124) target = $region20
        $region19: #{tpu_custom_call.1} parent=11 // pred_region
          _
        $region20: #{tpu_custom_call.1} parent=11 // pred_fallthru
          _
      $region12: #{tpu_custom_call.1} parent=5 // pred_fallthru
        _
      %p127 = scmp.lt.s32.totalorder %s12, 2
      // Predicated region
      $region21: #{tpu_custom_call.1} parent=5 // pred_check
        %p128 = pneg %p127
      $region22: #{tpu_custom_call.1} parent=5 // pred_check_branch
        %130 = sbr.rel (%p128) target = $region24
      $region23: #{tpu_custom_call.1} parent=5 // pred_region
        // Predicated region
        $region25: #{tpu_custom_call.1} parent=23 // pred_check
          %p131 = pneg %p32
        $region26: #{tpu_custom_call.1} parent=23 // pred_check_branch
          %133 = sbr.rel (%p131) target = $region28
        $region27: #{tpu_custom_call.1} parent=23 // pred_region
          %s134 = smul.u32 8, %s12
          %p135 = scmp.lt.s32.totalorder %s134, 15
          %s136 = scalar_select %p135, %s134, 15
          %s137 = smul.addr %s136, 8
          %s138 = scalar_lea.vmem %s0, %s137
          %s139 = smul.u32 8, %s12
        $region28: #{tpu_custom_call.1} parent=23 // pred_fallthru
          _
      $region24: #{tpu_custom_call.1} parent=5 // pred_fallthru
        _
      %p140 = scmp.le.s32.totalorder 1, %s12
      %p141 = scmp.lt.s32.totalorder %s12, 3
      %p142 = pnand %p140, %p141
      %p143 = pneg %p142
      // Predicated region
      $region29: #{tpu_custom_call.1} parent=5 // pred_check
        _
      $region30: #{tpu_custom_call.1} parent=5 // pred_check_branch
        %145 = sbr.rel (%p142) target = $region32
      $region31: #{tpu_custom_call.1} parent=5 // pred_region
        %s146 = ssub.s32 %s12, 1
        %s147 = smul.u32 8, %s17
        %p148 = scmp.lt.s32.totalorder %s147, 15
        %s149 = scalar_select %p148, %s147, 15
        %s150 = smul.addr %s149, 8
        %s151 = scalar_lea.vmem %s0, %s150
        %p152 = pneg %p38
        %p153 = pneg %p35
        %p154 = pneg %p59
        %p155 = pneg %p56
        %p156 = pneg %p80
        %p157 = pneg %p77
        %p158 = pneg %p106
        %p159 = pneg %p103
        %s160 = sand.u32 %s93, 1
        %s161 = scalar_lea.sflag [#allocation3], %s160
        %s162 = sand.u32 %s93, 1
        %s163 = smul.addr %s162, 64
        %s164 = scalar_lea.vmem [#allocation2], %s163
        %s165 = smul.u32 8, %s17
        %p166 = scmp.lt.s32.totalorder %s165, 15
        %s167 = scalar_select %p166, %s165, 15
        %s168 = smul.addr %s167, 8
        %s169 = scalar_lea.vmem %s0, %s168
        %s170 = smul.u32 8, %s17
        %s171 = smul.u32 8, %s17
        %v172 = vld [vmem:[%s169] sm:$0xff]
        %v173 = vld [vmem:[%s169 + $0x8] sm:$0xff]
        %v174 = vld [vmem:[%s169 + $0x10] sm:$0xff]
        %v175 = vld [vmem:[%s169 + $0x18] sm:$0xff]
        %v176 = vld [vmem:[%s169 + $0x20] sm:$0xff]
        %v177 = vld [vmem:[%s169 + $0x28] sm:$0xff]
        %v178 = vld [vmem:[%s169 + $0x30] sm:$0xff]
        %v179 = vld [vmem:[%s169 + $0x38] sm:$0xff]
        %v180 = vld [vmem:[%s1] sm:$0xff]
        %v181 = vld [vmem:[%s1 + $0x8] sm:$0xff]
        %v182 = vld [vmem:[%s1 + $0x10] sm:$0xff]
        %v183 = vld [vmem:[%s1 + $0x18] sm:$0xff]
        %v184 = vld [vmem:[%s1 + $0x20] sm:$0xff]
        %v185 = vld [vmem:[%s1 + $0x28] sm:$0xff]
        %v186 = vld [vmem:[%s1 + $0x30] sm:$0xff]
        %v187 = vld [vmem:[%s1 + $0x38] sm:$0xff]
        %v188 = vld [vmem:[%s2] sm:$0x1]
        %v190 = vperm.slane %v188, 0
        %vm192 = vcmask 523264
        %v194 = vsel %vm192, %v172, 0
        %v197 = vsel %vm192, %v173, 0
        %v200 = vsel %vm192, %v174, 0
        %v203 = vsel %vm192, %v175, 0
        %v206 = vsel %vm192, %v176, 0
        %v209 = vsel %vm192, %v177, 0
        %v212 = vsel %vm192, %v178, 0
        %v215 = vsel %vm192, %v179, 0
        %217 = vmatpush.msra.mxu0 0.0
        %218 = vmatpush.msra.mxu0 0.0
        %219 = vmatpush.msra.mxu0 0.0
        %220 = vmatpush.msra.mxu0 0.0
        %221 = vmatpush.msra.mxu0 0.0
        %222 = vmatpush.msra.mxu0 0.0
        %223 = vmatpush.msra.mxu0 0.0
        %224 = vmatpush.msra.mxu0 0.0
        %225 = vmatpush.msra.mxu0 %v187
        %226 = vmatpush.msra.mxu0 %v186
        %227 = vmatpush.msra.mxu0 %v185
        %228 = vmatpush.msra.mxu0 %v184
        %229 = vmatpush.msra.mxu0 %v183
        %230 = vmatpush.msra.mxu0 %v182
        %231 = vmatpush.msra.mxu0 %v181
        %232 = vmatpush.msra.mxu0 %v180
        %233 = vmatmul.f32.gmra.mxu0 %v194
        %v234 = vpop.f32.mrf.mxu0
        %v235 = vadd.f32 %v190, %v234
        %236 = vmatmul.f32.gmra.mxu0 %v197
        %v237 = vpop.f32.mrf.mxu0
        %v238 = vadd.f32 %v190, %v237
        %239 = vmatmul.f32.gmra.mxu0 %v200
        %v240 = vpop.f32.mrf.mxu0
        %v241 = vadd.f32 %v190, %v240
        %242 = vmatmul.f32.gmra.mxu0 %v203
        %v243 = vpop.f32.mrf.mxu0
        %v244 = vadd.f32 %v190, %v243
        %245 = vmatmul.f32.gmra.mxu0 %v206
        %v246 = vpop.f32.mrf.mxu0
        %v247 = vadd.f32 %v190, %v246
        %248 = vmatmul.f32.gmra.mxu0 %v209
        %v249 = vpop.f32.mrf.mxu0
        %v250 = vadd.f32 %v190, %v249
        %251 = vmatmul.f32.gmra.mxu0 %v212
        %v252 = vpop.f32.mrf.mxu0
        %v253 = vadd.f32 %v190, %v252
        %254 = vmatmul.f32.gmra.mxu0 %v215
        %v255 = vpop.f32.mrf.mxu0
        %v256 = vadd.f32 %v190, %v255
        %257 = vdwg.mxu0
        %258 = vst [vmem:[%s164] sm:$0xff] %v235
        %259 = vst [vmem:[%s164 + $0x8] sm:$0xff] %v238
        %260 = vst [vmem:[%s164 + $0x10] sm:$0xff] %v241
        %261 = vst [vmem:[%s164 + $0x18] sm:$0xff] %v244
        %262 = vst [vmem:[%s164 + $0x20] sm:$0xff] %v247
        %263 = vst [vmem:[%s164 + $0x28] sm:$0xff] %v250
        %264 = vst [vmem:[%s164 + $0x30] sm:$0xff] %v253
        %265 = vst [vmem:[%s164 + $0x38] sm:$0xff] %v256
        %s266 = sand.u32 %s93, 1
        %s267 = scalar_lea.sflag [#allocation3], %s266
        %s268 = sand.u32 %s93, 1
        %s269 = smul.addr %s268, 64
        %s270 = scalar_lea.vmem [#allocation2], %s269
        // Predicated region
        $region33: #{tpu_custom_call.1} parent=31 // pred_check
          %p271 = pneg %p103
        $region34: #{tpu_custom_call.1} parent=31 // pred_check_branch
          %273 = sbr.rel (%p271) target = $region36
        $region35: #{tpu_custom_call.1} parent=31 // pred_region
          %s274 = smul.u32 8, %s17
          %276 = vsyncadd %s267, 0
          %s277 = smul.addr %s274, 8
          %s278 = scalar_lea.hbm %s3, %s277
          %s279 = sshll.u32 %s270, 4
          %s280 = int_to_ptr.vmem [resolvable:$true] %s279
          %s281 = sshll.u32 %s278, 4
          %s282 = int_to_ptr.hbm [resolvable:$true] %s281
          %287 = dma.vmem_to_hbm [thread:$0]  %s280, 1024, %s282, %s267, 128, 128, 8
        $region36: #{tpu_custom_call.1} parent=31 // pred_fallthru
          _
      $region32: #{tpu_custom_call.1} parent=5 // pred_fallthru
        _
      %p288 = scmp.le.s32.totalorder 2, %s12
      // Predicated region
      $region37: #{tpu_custom_call.1} parent=5 // pred_check
        %p289 = pneg %p288
      $region38: #{tpu_custom_call.1} parent=5 // pred_check_branch
        %291 = sbr.rel (%p289) target = $region40
      $region39: #{tpu_custom_call.1} parent=5 // pred_region
        %s292 = ssub.s32 %s12, 2
        // Predicated region
        $region41: #{tpu_custom_call.1} parent=39 // pred_check
          %p293 = pneg %p109
        $region42: #{tpu_custom_call.1} parent=39 // pred_check_branch
          %295 = sbr.rel (%p293) target = $region44
        $region43: #{tpu_custom_call.1} parent=39 // pred_region
          %s296 = sand.u32 %s94, 1
          %s297 = scalar_lea.sflag [#allocation3], %s296
          %s298 = sand.u32 %s94, 1
          %s299 = smul.addr %s298, 64
          %s300 = scalar_lea.vmem [#allocation2], %s299
          %302 = dma.done %s297, 1024
        $region44: #{tpu_custom_call.1} parent=39 // pred_fallthru
          _
      $region40: #{tpu_custom_call.1} parent=5 // pred_fallthru
        _
    $region6: #{tpu_custom_call.1} parent=1 // loop_footer
      %s16 = sadd.s32 1, %s12
    $region7: #{tpu_custom_call.1} parent=1 // loop_footer_branch
      %11 = sbr.rel target = $region3
    $region8: #{tpu_custom_call.1} parent=1 // loop_exit
      _
    %303 = vsyncpa [#allocation3], 1
    %s304 = scalar_lea.sflag [#allocation3], 1
    %305 = vsyncpa %s304, 1

</llo_original>
